<compile_context>
chip_gen: v6e
topology: v6e:2x2x1
jax: 0.10.0
libtpu: 0.0.40
codegen_flags: <defaults>
</compile_context>

<pallas_src>
import math

import numpy as np

import jax
import jax.numpy as jnp
from jax.experimental import pallas as pl
from jax.experimental.pallas import tpu as pltpu


_SQRT_2_OVER_PI = math.sqrt(2.0 / math.pi)


def _gelu_tanh(x):
    # Matches torch.nn.GELU(approximate='tanh'):
    #   0.5 * x * (1 + tanh(sqrt(2/pi) * (x + 0.044715 * x^3)))
    return 0.5 * x * (1.0 + jnp.tanh(_SQRT_2_OVER_PI * (x + 0.044715 * x * x * x)))


def _round_up(x, m):
    return ((x + m - 1) // m) * m


def _vmem_limit_bytes():
    """Scoped-VMEM cap per generation: ~96 MiB on 128-MiB chips (v5e/v6e),
    ~48 MiB on 64-MiB chips (v7x).  Conservative fallback if the query fails."""
    cap = None
    try:
        cap = pltpu.get_tpu_info().vmem_capacity_bytes
    except Exception:
        cap = None
    if cap is not None and cap >= 96 * 1024 * 1024:
        return 96 * 1024 * 1024
    return 48 * 1024 * 1024


def _pick_tile(dim, requested, align):
    """Largest t <= requested with t % align == 0 and dim % t == 0.
    Small dims (<= requested) use the full extent (always a legal block)."""
    if dim <= requested:
        return dim
    if dim % align != 0:
        # Irregular dim: a single full-extent block is the only always-legal
        # choice here (only hit for the weight dims of unusual model sizes).
        return dim
    t = (min(requested, dim) // align) * align
    while t >= align:
        if dim % t == 0:
            return t
        t -= align
    return dim


# ===========================================================================
# Fused MLP kernel:  y = (gelu_tanh(x @ Wfc + bfc)) @ Wproj + bproj
#   grid = (M // tm,)  -- weights resident in VMEM, hidden tile in VMEM scratch.
# ===========================================================================
def _fused_mlp_kernel(x_ref, wfc_ref, bfc_ref, wpj_ref, bpj_ref, o_ref, h_ref):
    # c_fc: (tm, C) @ (C, H) with f32 accumulation on the MXU.
    h = jnp.dot(x_ref[...], wfc_ref[...], preferred_element_type=jnp.float32)
    h = _gelu_tanh(h + bfc_ref[...].astype(jnp.float32))
    # Stage the GELU'd hidden tile in VMEM in the matmul-input dtype
    # (bf16 in production); it never round-trips through HBM.
    h_ref[...] = h.astype(h_ref.dtype)
    # c_proj: (tm, H) @ (H, C) with f32 accumulation.
    y = jnp.dot(h_ref[...], wpj_ref[...], preferred_element_type=jnp.float32)
    o_ref[...] = (y + bpj_ref[...].astype(jnp.float32)).astype(o_ref.dtype)


def _fused_vmem_bytes(tm, C, H, x_bytes, out_bytes, w_bytes):
    weights = 2 * (C * H + H * C) * w_bytes      # assume double-buffered (worst case)
    biases = 2 * (H + C) * w_bytes
    x_tiles = 2 * tm * C * x_bytes               # double-buffered x tile
    o_tiles = 2 * tm * C * out_bytes             # double-buffered out tile
    h_scratch = tm * H * w_bytes                 # hidden staging scratch
    f32_temps = 2 * tm * H * 4                   # f32 pre-GELU acc + GELU temp
    return weights + biases + x_tiles + o_tiles + h_scratch + f32_temps


def mlp_fused(x2d, w_fc, b_fc, w_proj, b_proj, *, out_dtype, tm=512, vmem_limit=None):
    """Fused MLP.  Returns None if the weights do not fit the VMEM budget
    (caller falls back to the tiled two-linear path)."""
    M, C = x2d.shape
    Cw, H = w_fc.shape
    assert Cw == C and w_proj.shape == (H, C)

    if vmem_limit is None:
        vmem_limit = _vmem_limit_bytes()
    budget = int(vmem_limit * 0.8)

    w_bytes = jnp.dtype(w_fc.dtype).itemsize
    x_bytes = jnp.dtype(x2d.dtype).itemsize
    o_bytes = jnp.dtype(out_dtype).itemsize

    # Initial M tile: requested, clamped to (padded) M, multiple of 8.
    tm = max(8, min(tm, _round_up(M, 8)))
    tm = _round_up(tm, 8)
    # Keep >= 2 parallel grid blocks when M allows (v7x megacore sharding).
    if M > 8:
        tm = min(tm, _round_up((M + 1) // 2, 8))
    # Shrink tm until the whole working set fits the scoped-VMEM budget.
    while tm > 8 and _fused_vmem_bytes(tm, C, H, x_bytes, o_bytes, w_bytes) > budget:
        tm = max(8, (tm // 2 // 8) * 8)
    if _fused_vmem_bytes(tm, C, H, x_bytes, o_bytes, w_bytes) > budget:
        return None  # weights cannot stay resident -> tiled fallback

    # Pad M to a tile multiple (robust for any B*T); padded rows sliced off.
    Mp = _round_up(M, tm)
    if Mp != M:
        x2d = jnp.pad(x2d, ((0, Mp - M), (0, 0)))

    out = pl.pallas_call(
        _fused_mlp_kernel,
        out_shape=jax.ShapeDtypeStruct((Mp, C), out_dtype),
        grid_spec=pltpu.PrefetchScalarGridSpec(
            num_scalar_prefetch=0,
            grid=(Mp // tm,),
            in_specs=[
                pl.BlockSpec((tm, C), lambda i: (i, 0)),   # x tile (pipelined)
                pl.BlockSpec((C, H), lambda i: (0, 0)),    # W_fc   (VMEM-resident)
                pl.BlockSpec((1, H), lambda i: (0, 0)),    # b_fc
                pl.BlockSpec((H, C), lambda i: (0, 0)),    # W_proj (VMEM-resident)
                pl.BlockSpec((1, C), lambda i: (0, 0)),    # b_proj
            ],
            out_specs=pl.BlockSpec((tm, C), lambda i: (i, 0)),
            scratch_shapes=[pltpu.VMEM((tm, H), w_fc.dtype)],
        ),
        compiler_params=pltpu.CompilerParams(
            dimension_semantics=("parallel",),
            vmem_limit_bytes=vmem_limit,
        ),
    )(x2d, w_fc, b_fc.reshape(1, H), w_proj, b_proj.reshape(1, C))

    return out[:M] if Mp != M else out


# ===========================================================================
# Fallback: tiled linear  y = act(x @ W + b)  with a 3-D (M, N, K) grid.
# Only used when the weights are too big to keep VMEM-resident.
# ===========================================================================
def _make_linear_kernel(fuse_gelu):
    def kernel(x_ref, w_ref, b_ref, o_ref, acc_ref):
        k = pl.program_id(2)

        @pl.when(k == 0)
        def _():
            acc_ref[...] = jnp.zeros_like(acc_ref)

        acc_ref[...] += jnp.dot(
            x_ref[...], w_ref[...], preferred_element_type=jnp.float32
        )

        @pl.when(k == pl.num_programs(2) - 1)
        def _():
            y = acc_ref[...] + b_ref[...].astype(jnp.float32)
            if fuse_gelu:
                y = _gelu_tanh(y)
            o_ref[...] = y.astype(o_ref.dtype)

    return kernel


def linear_tiled(x2d, w_kn, b, *, fuse_gelu=False, out_dtype=None,
                 tm=512, tn=512, tk=1024, vmem_limit=None):
    """x2d: (M, K), w_kn: (K, N) [pre-transposed], b: (N,)."""
    M, K = x2d.shape
    K2, N = w_kn.shape
    assert K == K2, (K, K2)
    out_dtype = out_dtype if out_dtype is not None else x2d.dtype
    if vmem_limit is None:
        vmem_limit = _vmem_limit_bytes()

    tn = _pick_tile(N, tn, 128)
    tk = _pick_tile(K, tk, 128)
    tm = max(8, min(tm, _round_up(M, 8)))
    tm = _round_up(tm, 8)

    Mp = _round_up(M, tm)
    if Mp != M:
        x2d = jnp.pad(x2d, ((0, Mp - M), (0, 0)))

    grid = (Mp // tm, N // tn, K // tk)
    b2d = b.reshape(1, N)

    out = pl.pallas_call(
        _make_linear_kernel(fuse_gelu),
        out_shape=jax.ShapeDtypeStruct((Mp, N), out_dtype),
        grid_spec=pltpu.PrefetchScalarGridSpec(
            num_scalar_prefetch=0,
            grid=grid,
            in_specs=[
                pl.BlockSpec((tm, tk), lambda i, j, k: (i, k)),
                pl.BlockSpec((tk, tn), lambda i, j, k: (k, j)),
                pl.BlockSpec((1, tn), lambda i, j, k: (0, j)),
            ],
            out_specs=pl.BlockSpec((tm, tn), lambda i, j, k: (i, j)),
            scratch_shapes=[pltpu.VMEM((tm, tn), jnp.float32)],
        ),
        compiler_params=pltpu.CompilerParams(
            dimension_semantics=("parallel", "parallel", "arbitrary"),
            vmem_limit_bytes=vmem_limit,
        ),
    )(x2d, w_kn, b2d)

    return out[:M] if Mp != M else out


# ===========================================================================
# Full MLP forward + parameter preparation
# ===========================================================================
def make_params(w_fc_pt, b_fc, w_proj_pt, b_proj, *, compute_dtype=jnp.bfloat16):
    """PyTorch nn.Linear weights are (out_features, in_features).  Transpose
    to (K, N) and cast to the MXU compute dtype ONCE at parameter-load time."""
    return {
        "w_fc": jnp.asarray(w_fc_pt).T.astype(compute_dtype),      # (C, 4C)
        "b_fc": jnp.asarray(b_fc, dtype=jnp.float32),
        "w_proj": jnp.asarray(w_proj_pt).T.astype(compute_dtype),  # (4C, C)
        "b_proj": jnp.asarray(b_proj, dtype=jnp.float32),
    }


def mlp(x, params):
    """x: (B, T, C) -> (B, T, C).  y = c_proj(gelu_tanh(c_fc(x)))."""
    B, T, C = x.shape
    w_fc, b_fc = params["w_fc"], params["b_fc"]
    w_proj, b_proj = params["w_proj"], params["b_proj"]
    out_dtype = x.dtype

    x2d = x.reshape(B * T, C)
    if x2d.dtype != w_fc.dtype:                    # bf16 MXU inputs in production
        x2d = x2d.astype(w_fc.dtype)

    vmem_limit = _vmem_limit_bytes()
    y = mlp_fused(x2d, w_fc, b_fc, w_proj, b_proj,
                  out_dtype=out_dtype, vmem_limit=vmem_limit)
    if y is None:
        # Weights too large to keep resident: two tiled linears.  The GELU is
        # fused into the first linear's finalize and the intermediate h stays
        # in the compute dtype (bf16) to halve its HBM traffic.
        h = linear_tiled(x2d, w_fc, b_fc, fuse_gelu=True,
                         out_dtype=w_fc.dtype, vmem_limit=vmem_limit)
        y = linear_tiled(h, w_proj, b_proj, fuse_gelu=False,
                         out_dtype=out_dtype, vmem_limit=vmem_limit)
    return y.reshape(B, T, C)


# ===========================================================================
# float64 numpy reference (mirrors the PyTorch module exactly)
# ===========================================================================
def reference_np(x, w_fc_pt, b_fc, w_proj_pt, b_proj):
    x64 = np.asarray(x, dtype=np.float64)
    wfc = np.asarray(w_fc_pt, dtype=np.float64)
    bfc = np.asarray(b_fc, dtype=np.float64)
    wpj = np.asarray(w_proj_pt, dtype=np.float64)
    bpj = np.asarray(b_proj, dtype=np.float64)
    h = x64 @ wfc.T + bfc
    h = 0.5 * h * (1.0 + np.tanh(_SQRT_2_OVER_PI * (h + 0.044715 * h ** 3)))
    return h @ wpj.T + bpj


if __name__ == "__main__":
    # Small GPT-2-like config: B=2, T=8, n_embd=32  ->  hidden = 4*32 = 128
    B, T, C = 2, 8, 32
    H = 4 * C

    key = jax.random.PRNGKey(0)
    kx, k1, k2, k3, k4 = jax.random.split(key, 5)

    x = jax.random.normal(kx, (B, T, C), dtype=jnp.float32)

    # PyTorch nn.Linear weights are (out_features, in_features).
    w_fc_pt = jax.random.normal(k1, (H, C), dtype=jnp.float32) * 0.02
    b_fc = jax.random.normal(k2, (H,), dtype=jnp.float32) * 0.02
    w_proj_pt = jax.random.normal(k3, (C, H), dtype=jnp.float32) * 0.02
    b_proj = jax.random.normal(k4, (C,), dtype=jnp.float32) * 0.02

    ref = reference_np(x, w_fc_pt, b_fc, w_proj_pt, b_proj)

    # --- f32-stored params: tight tolerance (fused kernel path) ---
    params_f32 = make_params(w_fc_pt, b_fc, w_proj_pt, b_proj,
                             compute_dtype=jnp.float32)
    out = jax.block_until_ready(mlp(x, params_f32))
    assert out.shape == (B, T, C)
    assert np.allclose(np.asarray(out, dtype=np.float64), ref,
                       atol=5e-4, rtol=5e-3), "f32 fused path mismatch vs reference"

    # --- bf16-stored params (production default): loose tolerance ---
    params_bf16 = make_params(w_fc_pt, b_fc, w_proj_pt, b_proj)
    out_bf16 = jax.block_until_ready(mlp(x, params_bf16))
    assert np.allclose(np.asarray(out_bf16, dtype=np.float64), ref,
                       atol=5e-3, rtol=5e-2), "bf16 fused path mismatch vs reference"

    # --- also exercise the tiled two-linear fallback path once ---
    x2d = x.reshape(B * T, C)
    h_t = linear_tiled(x2d, params_f32["w_fc"], params_f32["b_fc"],
                       fuse_gelu=True, out_dtype=jnp.float32)
    y_t = linear_tiled(h_t, params_f32["w_proj"], params_f32["b_proj"],
                       fuse_gelu=False, out_dtype=jnp.float32)
    y_t = jax.block_until_ready(y_t).reshape(B, T, C)
    assert np.allclose(np.asarray(y_t, dtype=np.float64), ref,
                       atol=5e-4, rtol=5e-3), "tiled fallback mismatch vs reference"

    print("KERNEL_OK")
</pallas_src>

<mosaic_0001>
module attributes {stable_mosaic.version = 11 : i64} {
  func.func @_fused_mlp_kernel(%arg0: i32, %arg1: memref<8x32xf32, #tpu.memory_space<vmem>>, %arg2: memref<32x128xf32, #tpu.memory_space<vmem>>, %arg3: memref<1x128xf32, #tpu.memory_space<vmem>>, %arg4: memref<128x32xf32, #tpu.memory_space<vmem>>, %arg5: memref<1x32xf32, #tpu.memory_space<vmem>>, %arg6: memref<8x32xf32, #tpu.memory_space<vmem>>, %arg7: memref<8x128xf32, #tpu.memory_space<vmem>>) attributes {dimension_semantics = [#tpu.dimension_semantics<parallel>], iteration_bounds = array<i64: 2>, scalar_prefetch = 0 : i64, scratch_operands = 1 : i64, tpu.core_type = #tpu.core_type<tc>, window_params = [{transform_indices = @transform_0, window_bounds = array<i64: 8, 32>}, {pipeline_mode = #tpu.pipeline_mode<synchronous>, transform_indices = @transform_1, window_bounds = array<i64: 32, 128>}, {pipeline_mode = #tpu.pipeline_mode<synchronous>, transform_indices = @transform_2, window_bounds = array<i64: 1, 128>}, {pipeline_mode = #tpu.pipeline_mode<synchronous>, transform_indices = @transform_3, window_bounds = array<i64: 128, 32>}, {pipeline_mode = #tpu.pipeline_mode<synchronous>, transform_indices = @transform_4, window_bounds = array<i64: 1, 32>}, {transform_indices = @transform_5, window_bounds = array<i64: 8, 32>}]} {
    %c0 = arith.constant 0 : index
    %c0_0 = arith.constant 0 : index
    %0 = vector.load %arg1[%c0, %c0_0] : memref<8x32xf32, #tpu.memory_space<vmem>>, vector<8x32xf32>
    %c0_1 = arith.constant 0 : index
    %c0_2 = arith.constant 0 : index
    %1 = vector.load %arg2[%c0_1, %c0_2] : memref<32x128xf32, #tpu.memory_space<vmem>>, vector<32x128xf32>
    %cst = arith.constant dense<0.000000e+00> : vector<8x128xf32>
    %2 = tpu.matmul %0, %1, %cst {dimension_numbers = #tpu.dot_dimension_numbers<[1], [0], [0], [1], [0, 0, 1, 1], [], []>} : vector<8x32xf32>, vector<32x128xf32>, vector<8x128xf32> -> vector<8x128xf32>
    %c0_3 = arith.constant 0 : index
    %c0_4 = arith.constant 0 : index
    %3 = vector.load %arg3[%c0_3, %c0_4] : memref<1x128xf32, #tpu.memory_space<vmem>>, vector<1x128xf32>
    %4 = vector.broadcast %3 : vector<1x128xf32> to vector<8x128xf32>
    %5 = arith.addf %2, %4 : vector<8x128xf32>
    %cst_5 = arith.constant 5.000000e-01 : f32
    %6 = vector.broadcast %cst_5 : f32 to vector<8x128xf32>
    %7 = arith.mulf %6, %5 : vector<8x128xf32>
    %cst_6 = arith.constant 4.471500e-02 : f32
    %8 = vector.broadcast %cst_6 : f32 to vector<8x128xf32>
    %9 = arith.mulf %8, %5 : vector<8x128xf32>
    %10 = arith.mulf %9, %5 : vector<8x128xf32>
    %11 = arith.mulf %10, %5 : vector<8x128xf32>
    %12 = arith.addf %5, %11 : vector<8x128xf32>
    %cst_7 = arith.constant 0.797884583 : f32
    %13 = vector.broadcast %cst_7 : f32 to vector<8x128xf32>
    %14 = arith.mulf %13, %12 : vector<8x128xf32>
    %15 = math.tanh %14 : vector<8x128xf32>
    %cst_8 = arith.constant 1.000000e+00 : f32
    %16 = vector.broadcast %cst_8 : f32 to vector<8x128xf32>
    %17 = arith.addf %16, %15 : vector<8x128xf32>
    %18 = arith.mulf %7, %17 : vector<8x128xf32>
    %c0_9 = arith.constant 0 : index
    %c0_10 = arith.constant 0 : index
    %19 = vector.load %arg7[%c0_9, %c0_10] : memref<8x128xf32, #tpu.memory_space<vmem>>, vector<8x128xf32>
    tpu.vector_store %arg7[%c0_9, %c0_10], %18 {strides = array<i32>} : memref<8x128xf32, #tpu.memory_space<vmem>>, vector<8x128xf32>,
    %c0_11 = arith.constant 0 : index
    %c0_12 = arith.constant 0 : index
    %20 = vector.load %arg7[%c0_11, %c0_12] : memref<8x128xf32, #tpu.memory_space<vmem>>, vector<8x128xf32>
    %c0_13 = arith.constant 0 : index
    %c0_14 = arith.constant 0 : index
    %21 = vector.load %arg4[%c0_13, %c0_14] : memref<128x32xf32, #tpu.memory_space<vmem>>, vector<128x32xf32>
    %cst_15 = arith.constant dense<0.000000e+00> : vector<8x32xf32>
    %22 = tpu.matmul %20, %21, %cst_15 {dimension_numbers = #tpu.dot_dimension_numbers<[1], [0], [0], [1], [0, 0, 1, 1], [], []>} : vector<8x128xf32>, vector<128x32xf32>, vector<8x32xf32> -> vector<8x32xf32>
    %c0_16 = arith.constant 0 : index
    %c0_17 = arith.constant 0 : index
    %23 = vector.load %arg5[%c0_16, %c0_17] : memref<1x32xf32, #tpu.memory_space<vmem>>, vector<1x32xf32>
    %24 = vector.broadcast %23 : vector<1x32xf32> to vector<8x32xf32>
    %25 = arith.addf %22, %24 : vector<8x32xf32>
    %c0_18 = arith.constant 0 : index
    %c0_19 = arith.constant 0 : index
    %26 = vector.load %arg6[%c0_18, %c0_19] : memref<8x32xf32, #tpu.memory_space<vmem>>, vector<8x32xf32>
    tpu.vector_store %arg6[%c0_18, %c0_19], %25 {strides = array<i32>} : memref<8x32xf32, #tpu.memory_space<vmem>>, vector<8x32xf32>,
    return
  }
  func.func @transform_0(%arg0: i32) -> (i32, i32) {
    %c0_i32 = arith.constant 0 : i32
    %c0_i32_0 = arith.constant 0 : i32
    return %arg0, %c0_i32 : i32, i32
  }
  func.func @transform_1(%arg0: i32) -> (i32, i32) {
    %c0_i32 = arith.constant 0 : i32
    %c0_i32_0 = arith.constant 0 : i32
    %c0_i32_1 = arith.constant 0 : i32
    return %c0_i32, %c0_i32_0 : i32, i32
  }
  func.func @transform_2(%arg0: i32) -> (i32, i32) {
    %c0_i32 = arith.constant 0 : i32
    %c0_i32_0 = arith.constant 0 : i32
    %c0_i32_1 = arith.constant 0 : i32
    return %c0_i32, %c0_i32_0 : i32, i32
  }
  func.func @transform_3(%arg0: i32) -> (i32, i32) {
    %c0_i32 = arith.constant 0 : i32
    %c0_i32_0 = arith.constant 0 : i32
    %c0_i32_1 = arith.constant 0 : i32
    return %c0_i32, %c0_i32_0 : i32, i32
  }
  func.func @transform_4(%arg0: i32) -> (i32, i32) {
    %c0_i32 = arith.constant 0 : i32
    %c0_i32_0 = arith.constant 0 : i32
    %c0_i32_1 = arith.constant 0 : i32
    return %c0_i32, %c0_i32_0 : i32, i32
  }
  func.func @transform_5(%arg0: i32) -> (i32, i32) {
    %c0_i32 = arith.constant 0 : i32
    %c0_i32_0 = arith.constant 0 : i32
    return %arg0, %c0_i32 : i32, i32
  }
}

</mosaic_0001>

<llo_original>
// kernel: tpu_custom_call.1
$region0: #{tpu_custom_call.1}
  #allocation0 [shape = 'u32[]', space=smem, size = 0x4, offset = 0x4, fixed_abs, tag = 'smem constant byte address 0x4 - core index']
  #allocation1 [shape = 'u32[144,128]{1,0:T(1,128)}', space=vmem, size = 0x12000, scoped, tag = 'internal scratch']
  #allocation2 [shape = 'f32[8,128]{1,0:T(8,128)}', space=vmem, size = 0x1000, scoped, tag = 'scratch operand']
  %s0 = inlined_call_operand.vmem [shape: f32[16,32], index: 0, kind: input, shape index: {}]
  %s1 = inlined_call_operand.vmem [shape: f32[32,128], index: 1, kind: input, shape index: {}]
  %s2 = inlined_call_operand.vmem [shape: f32[1,128], index: 2, kind: input, shape index: {}]
  %s3 = inlined_call_operand.vmem [shape: f32[128,32], index: 3, kind: input, shape index: {}]
  %s4 = inlined_call_operand.vmem [shape: f32[1,32], index: 4, kind: input, shape index: {}]
  %s5 = inlined_call_operand.hbm [shape: f32[16,32], index: 5, kind: output, shape index: {}]
  %s6 = sld [smem:[#allocation0]]
  $region53: #{tpu_custom_call.1} parent=0
    _
  %s8 = ssub.s32 1, %s6
  %s9 = scalar_select 0, %s8, %s6
  $region1: #{tpu_custom_call.1} parent=0
    #allocation3 [shape = 'u8[8192]{0}', space=vmem, size = 0x2000, scoped, tag = 'output window, operand 0']
    #allocation4 [shape = 's32[2]{0}', space=sflag, size = 0x8, scoped, tag = 'scoped memory for tpu_custom_call.1']
    %10 = vsyncpa [#allocation4], 0
    %s11 = scalar_lea.sflag [#allocation4], 1
    %12 = vsyncpa %s11, 0
    loop: start=0, step=1, limit=4
    $region2: #{tpu_custom_call.1} parent=1 // loop_pre_header
      _
    $region3: #{tpu_custom_call.1} parent=1 // loop_header
      %s14 = sphi 0, %s18
      %p15 = scmp.ge.s32.totalorder %s14, 4
      %s24 = sphi 0, %s26
      %s27 = sphi 0, %s24
      %s28 = sphi 0, %s27
      %s44 = sphi 0, %s28
      %s48 = sphi 0, %s48
      %s50 = sphi 0, %s48
      %s51 = sphi 0, %s50
      %s65 = sphi 0, %s51
      %s69 = sphi 0, %s69
      %s71 = sphi 0, %s69
      %s72 = sphi 0, %s71
      %s86 = sphi 0, %s72
      %s90 = sphi 0, %s90
      %s92 = sphi 0, %s90
      %s93 = sphi 0, %s92
      %s107 = sphi 0, %s93
      %s111 = sphi 0, %s111
      %s113 = sphi 0, %s111
      %s114 = sphi 0, %s113
      %s128 = sphi 0, %s114
      %s134 = sphi 0, %s136
      %s137 = sphi 0, %s134
      %s138 = sphi 0, %s137
      %s154 = sphi 0, %s138
    $region4: #{tpu_custom_call.1} parent=1 // loop_header_branch
      %17 = sbr.rel (%p15) target = $region8
    $region5: #{tpu_custom_call.1} parent=1 // loop_body
      %s19 = ssub.s32 %s14, 1
      %s20 = ssub.s32 %s14, 2
      %s21 = sadd.s32 %s14, 1
      %s22 = ssub.s32 %s14, %s21
      %p23 = scmp.eq.s32.totalorder %s22, 0
      %s25 = sadd.s32 %s24, 1
      %s26 = scalar_select %p23, %s24, %s25
      %p29 = pneg %p23
      %p30 = scmp.eq.s32.totalorder %s14, 1
      %p31 = por %p29, %p30
      %p32 = scmp.ne.s32.totalorder %s24, %s27
      %p33 = scmp.eq.s32.totalorder %s14, 0
      %p34 = por %p32, %p33
      %p35 = scmp.ne.s32.totalorder %s24, %s27
      %p36 = scmp.eq.s32.totalorder %s19, 1
      %p37 = por %p35, %p36
      %p38 = scmp.ne.s32.totalorder %s27, %s28
      %p39 = scmp.eq.s32.totalorder %s19, 0
      %p40 = por %p38, %p39
      %p41 = scmp.ne.s32.totalorder %s27, %s28
      %p42 = scmp.eq.s32.totalorder %s20, 1
      %p43 = por %p41, %p42
      %p45 = scmp.ne.s32.totalorder %s28, %s44
      %p46 = scmp.eq.s32.totalorder %s20, 0
      %p47 = por %p45, %p46
      %s49 = sadd.s32 %s48, 1
      %p52 = scmp.eq.s32.totalorder %s14, 1
      %p53 = scmp.ne.s32.totalorder %s48, %s50
      %p54 = scmp.eq.s32.totalorder %s14, 0
      %p55 = por %p53, %p54
      %p56 = scmp.ne.s32.totalorder %s48, %s50
      %p57 = scmp.eq.s32.totalorder %s19, 1
      %p58 = por %p56, %p57
      %p59 = scmp.ne.s32.totalorder %s50, %s51
      %p60 = scmp.eq.s32.totalorder %s19, 0
      %p61 = por %p59, %p60
      %p62 = scmp.ne.s32.totalorder %s50, %s51
      %p63 = scmp.eq.s32.totalorder %s20, 1
      %p64 = por %p62, %p63
      %p66 = scmp.ne.s32.totalorder %s51, %s65
      %p67 = scmp.eq.s32.totalorder %s20, 0
      %p68 = por %p66, %p67
      %s70 = sadd.s32 %s69, 1
      %p73 = scmp.eq.s32.totalorder %s14, 1
      %p74 = scmp.ne.s32.totalorder %s69, %s71
      %p75 = scmp.eq.s32.totalorder %s14, 0
      %p76 = por %p74, %p75
      %p77 = scmp.ne.s32.totalorder %s69, %s71
      %p78 = scmp.eq.s32.totalorder %s19, 1
      %p79 = por %p77, %p78
      %p80 = scmp.ne.s32.totalorder %s71, %s72
      %p81 = scmp.eq.s32.totalorder %s19, 0
      %p82 = por %p80, %p81
      %p83 = scmp.ne.s32.totalorder %s71, %s72
      %p84 = scmp.eq.s32.totalorder %s20, 1
      %p85 = por %p83, %p84
      %p87 = scmp.ne.s32.totalorder %s72, %s86
      %p88 = scmp.eq.s32.totalorder %s20, 0
      %p89 = por %p87, %p88
      %s91 = sadd.s32 %s90, 1
      %p94 = scmp.eq.s32.totalorder %s14, 1
      %p95 = scmp.ne.s32.totalorder %s90, %s92
      %p96 = scmp.eq.s32.totalorder %s14, 0
      %p97 = por %p95, %p96
      %p98 = scmp.ne.s32.totalorder %s90, %s92
      %p99 = scmp.eq.s32.totalorder %s19, 1
      %p100 = por %p98, %p99
      %p101 = scmp.ne.s32.totalorder %s92, %s93
      %p102 = scmp.eq.s32.totalorder %s19, 0
      %p103 = por %p101, %p102
      %p104 = scmp.ne.s32.totalorder %s92, %s93
      %p105 = scmp.eq.s32.totalorder %s20, 1
      %p106 = por %p104, %p105
      %p108 = scmp.ne.s32.totalorder %s93, %s107
      %p109 = scmp.eq.s32.totalorder %s20, 0
      %p110 = por %p108, %p109
      %s112 = sadd.s32 %s111, 1
      %p115 = scmp.eq.s32.totalorder %s14, 1
      %p116 = scmp.ne.s32.totalorder %s111, %s113
      %p117 = scmp.eq.s32.totalorder %s14, 0
      %p118 = por %p116, %p117
      %p119 = scmp.ne.s32.totalorder %s111, %s113
      %p120 = scmp.eq.s32.totalorder %s19, 1
      %p121 = por %p119, %p120
      %p122 = scmp.ne.s32.totalorder %s113, %s114
      %p123 = scmp.eq.s32.totalorder %s19, 0
      %p124 = por %p122, %p123
      %p125 = scmp.ne.s32.totalorder %s113, %s114
      %p126 = scmp.eq.s32.totalorder %s20, 1
      %p127 = por %p125, %p126
      %p129 = scmp.ne.s32.totalorder %s114, %s128
      %p130 = scmp.eq.s32.totalorder %s20, 0
      %p131 = por %p129, %p130
      %s132 = ssub.s32 %s14, %s21
      %p133 = scmp.eq.s32.totalorder %s132, 0
      %s135 = sadd.s32 %s134, 1
      %s136 = scalar_select %p133, %s134, %s135
      %p139 = pneg %p133
      %p140 = scmp.eq.s32.totalorder %s14, 1
      %p141 = por %p139, %p140
      %p142 = scmp.ne.s32.totalorder %s134, %s137
      %p143 = scmp.eq.s32.totalorder %s14, 0
      %p144 = por %p142, %p143
      %p145 = scmp.ne.s32.totalorder %s134, %s137
      %p146 = scmp.eq.s32.totalorder %s19, 1
      %p147 = por %p145, %p146
      %p148 = scmp.ne.s32.totalorder %s137, %s138
      %p149 = scmp.eq.s32.totalorder %s19, 0
      %p150 = por %p148, %p149
      %p151 = scmp.ne.s32.totalorder %s137, %s138
      %p152 = scmp.eq.s32.totalorder %s20, 1
      %p153 = por %p151, %p152
      %p155 = scmp.ne.s32.totalorder %s138, %s154
      %p156 = scmp.eq.s32.totalorder %s20, 0
      %p157 = por %p155, %p156
      %p158 = scmp.le.s32.totalorder 1, %s14
      %p159 = scmp.lt.s32.totalorder %s14, 3
      %p160 = pnand %p158, %p159
      %p161 = pneg %p160
      // Predicated region
      $region9: #{tpu_custom_call.1} parent=5 // pred_check
        _
      $region10: #{tpu_custom_call.1} parent=5 // pred_check_branch
        %163 = sbr.rel (%p160) target = $region12
      $region11: #{tpu_custom_call.1} parent=5 // pred_region
        %s164 = ssub.s32 %s14, 1
        // Predicated region
        $region13: #{tpu_custom_call.1} parent=11 // pred_check
          %p165 = pneg %p61
        $region14: #{tpu_custom_call.1} parent=11 // pred_check_branch
          %167 = sbr.rel (%p165) target = $region16
        $region15: #{tpu_custom_call.1} parent=11 // pred_region
          _
        $region16: #{tpu_custom_call.1} parent=11 // pred_fallthru
          _
        // Predicated region
        $region17: #{tpu_custom_call.1} parent=11 // pred_check
          %p168 = pneg %p82
        $region18: #{tpu_custom_call.1} parent=11 // pred_check_branch
          %170 = sbr.rel (%p168) target = $region20
        $region19: #{tpu_custom_call.1} parent=11 // pred_region
          _
        $region20: #{tpu_custom_call.1} parent=11 // pred_fallthru
          _
        // Predicated region
        $region21: #{tpu_custom_call.1} parent=11 // pred_check
          %p171 = pneg %p103
        $region22: #{tpu_custom_call.1} parent=11 // pred_check_branch
          %173 = sbr.rel (%p171) target = $region24
        $region23: #{tpu_custom_call.1} parent=11 // pred_region
          _
        $region24: #{tpu_custom_call.1} parent=11 // pred_fallthru
          _
        // Predicated region
        $region25: #{tpu_custom_call.1} parent=11 // pred_check
          %p174 = pneg %p124
        $region26: #{tpu_custom_call.1} parent=11 // pred_check_branch
          %176 = sbr.rel (%p174) target = $region28
        $region27: #{tpu_custom_call.1} parent=11 // pred_region
          _
        $region28: #{tpu_custom_call.1} parent=11 // pred_fallthru
          _
      $region12: #{tpu_custom_call.1} parent=5 // pred_fallthru
        _
      %p177 = scmp.lt.s32.totalorder %s14, 2
      // Predicated region
      $region29: #{tpu_custom_call.1} parent=5 // pred_check
        %p178 = pneg %p177
      $region30: #{tpu_custom_call.1} parent=5 // pred_check_branch
        %180 = sbr.rel (%p178) target = $region32
      $region31: #{tpu_custom_call.1} parent=5 // pred_region
        // Predicated region
        $region33: #{tpu_custom_call.1} parent=31 // pred_check
          %p181 = pneg %p34
        $region34: #{tpu_custom_call.1} parent=31 // pred_check_branch
          %183 = sbr.rel (%p181) target = $region36
        $region35: #{tpu_custom_call.1} parent=31 // pred_region
          %p184 = scmp.lt.s32.totalorder %s14, 1
          %s185 = scalar_select %p184, %s14, 1
          %s186 = smul.addr %s185, 8
          %s187 = scalar_lea.vmem %s0, %s186
        $region36: #{tpu_custom_call.1} parent=31 // pred_fallthru
          _
      $region32: #{tpu_custom_call.1} parent=5 // pred_fallthru
        _
      %p188 = scmp.le.s32.totalorder 1, %s14
      %p189 = scmp.lt.s32.totalorder %s14, 3
      %p190 = pnand %p188, %p189
      %p191 = pneg %p190
      // Predicated region
      $region37: #{tpu_custom_call.1} parent=5 // pred_check
        _
      $region38: #{tpu_custom_call.1} parent=5 // pred_check_branch
        %193 = sbr.rel (%p190) target = $region40
      $region39: #{tpu_custom_call.1} parent=5 // pred_region
        %s194 = ssub.s32 %s14, 1
        %p195 = scmp.lt.s32.totalorder %s19, 1
        %s196 = scalar_select %p195, %s19, 1
        %s197 = smul.addr %s196, 8
        %s198 = scalar_lea.vmem %s0, %s197
        %p199 = pneg %p40
        %p200 = pneg %p37
        %p201 = pneg %p61
        %p202 = pneg %p58
        %p203 = pneg %p82
        %p204 = pneg %p79
        %p205 = pneg %p103
        %p206 = pneg %p100
        %p207 = pneg %p124
        %p208 = pneg %p121
        %p209 = pneg %p150
        %p210 = pneg %p147
        %s211 = sand.u32 %s137, 1
        %s212 = scalar_lea.sflag [#allocation4], %s211
        %s213 = sand.u32 %s137, 1
        %s214 = smul.addr %s213, 8
        %s215 = scalar_lea.vmem [#allocation3], %s214
        %p216 = scmp.lt.s32.totalorder %s19, 1
        %s217 = scalar_select %p216, %s19, 1
        %s218 = smul.addr %s217, 8
        %s219 = scalar_lea.vmem %s0, %s218
        %v220 = vld [vmem:[%s219] sm:$0xff]
        %v221 = vld [vmem:[%s1] sm:$0xff]
        %v222 = vld [vmem:[%s1 + $0x8] sm:$0xff]
        %v223 = vld [vmem:[%s1 + $0x10] sm:$0xff]
        %v224 = vld [vmem:[%s1 + $0x18] sm:$0xff]
        %v225 = vld [vmem:[%s2] sm:$0x1]
        %v227 = vlaneseq
        %v228 = vshrl.u32 %v227, 7
        %v229 = vsub.s32 0, %v228
        %v230 = vrot.slane %v225, %v229
        %vm232 = vcmask 261120
        %v234 = vsel %vm232, %v220, 0
        %236 = vmatprep.subr.mxu0 0.0
        %237 = vmatpush1.msra.mxu0 0.0
        %238 = vmatprep.subr.mxu0 0.0
        %239 = vmatpush1.msra.mxu0 0.0
        %240 = vmatprep.subr.mxu0 0.0
        %241 = vmatpush1.msra.mxu0 0.0
        %242 = vmatprep.subr.mxu0 0.0
        %243 = vmatpush1.msra.mxu0 0.0
        %244 = vmatprep.subr.mxu0 0.0
        %245 = vmatpush1.msra.mxu0 0.0
        %246 = vmatprep.subr.mxu0 0.0
        %247 = vmatpush1.msra.mxu0 0.0
        %248 = vmatprep.subr.mxu0 0.0
        %249 = vmatpush1.msra.mxu0 0.0
        %250 = vmatprep.subr.mxu0 0.0
        %251 = vmatpush1.msra.mxu0 0.0
        %252 = vmatprep.subr.mxu0 0.0
        %253 = vmatpush1.msra.mxu0 0.0
        %254 = vmatprep.subr.mxu0 0.0
        %255 = vmatpush1.msra.mxu0 0.0
        %256 = vmatprep.subr.mxu0 0.0
        %257 = vmatpush1.msra.mxu0 0.0
        %258 = vmatprep.subr.mxu0 0.0
        %259 = vmatpush1.msra.mxu0 0.0
        %260 = vmatprep.subr.mxu0 0.0
        %261 = vmatpush1.msra.mxu0 %v224
        %262 = vmatprep.subr.mxu0 0.0
        %263 = vmatpush1.msra.mxu0 %v223
        %264 = vmatprep.subr.mxu0 0.0
        %265 = vmatpush1.msra.mxu0 %v222
        %266 = vmatprep.subr.mxu0 0.0
        %267 = vmatpush1.msra.mxu0 %v221
        %268 = vmatprep.subr.mxu0 0.0
        %269 = vmatpush2.msra.mxu0 0.0
        %270 = vmatprep.subr.mxu0 0.0
        %271 = vmatpush2.msra.mxu0 0.0
        %272 = vmatprep.subr.mxu0 0.0
        %273 = vmatpush2.msra.mxu0 0.0
        %274 = vmatprep.subr.mxu0 0.0
        %275 = vmatpush2.msra.mxu0 0.0
        %276 = vmatprep.subr.mxu0 0.0
        %277 = vmatpush2.msra.mxu0 0.0
        %278 = vmatprep.subr.mxu0 0.0
        %279 = vmatpush2.msra.mxu0 0.0
        %280 = vmatprep.subr.mxu0 0.0
        %281 = vmatpush2.msra.mxu0 0.0
        %282 = vmatprep.subr.mxu0 0.0
        %283 = vmatpush2.msra.mxu0 0.0
        %284 = vmatprep.subr.mxu0 0.0
        %285 = vmatpush2.msra.mxu0 0.0
        %286 = vmatprep.subr.mxu0 0.0
        %287 = vmatpush2.msra.mxu0 0.0
        %288 = vmatprep.subr.mxu0 0.0
        %289 = vmatpush2.msra.mxu0 0.0
        %290 = vmatprep.subr.mxu0 0.0
        %291 = vmatpush2.msra.mxu0 0.0
        %292 = vmatprep.subr.mxu0 0.0
        %293 = vmatpush2.msra.mxu0 0.0
        %294 = vmatprep.subr.mxu0 0.0
        %295 = vmatpush2.msra.mxu0 0.0
        %296 = vmatprep.subr.mxu0 0.0
        %297 = vmatpush2.msra.mxu0 0.0
        %298 = vmatprep.subr.mxu0 0.0
        %299 = vmatpush2.msra.mxu0 0.0
        %300 = vmatprep.mubr.f32.mxu0 0.0
        %301 = vmatmul.mubr.f32.gmra.mxu0 %v234
        %v302 = vpop.f32.mrf.mxu0
        %v303 = vadd.f32 %v230, %v302
        %v304 = vpop.f32.mrf.mxu0
        %305 = vdwg.mxu0
        %v306 = vmul.f32 %v303, 0.5
        %v307 = vmul.f32 %v303, 0.044715
        %v308 = vmul.f32 %v307, %v303
        %v309 = vmul.f32 %v308, %v303
        %v310 = vadd.f32 %v303, %v309
        %v311 = vmul.f32 %v310, 0.7978846
        %v312 = vtanh.pop %v311
        %v313 = vadd.f32 %v312, 1.0
        %v314 = vmul.f32 %v306, %v313
        %315 = vst [vmem:[#allocation2] sm:$0xff] %v314
        %v316 = vld [vmem:[#allocation2] sm:$0xff]
        %v317 = vld [vmem:[%s3] sm:$0xff]
        %v318 = vld [vmem:[%s3 + $0x8] sm:$0xff]
        %v319 = vld [vmem:[%s3 + $0x10] sm:$0xff]
        %v320 = vld [vmem:[%s3 + $0x18] sm:$0xff]
        %v321 = vld [vmem:[%s3 + $0x20] sm:$0xff]
        %v322 = vld [vmem:[%s3 + $0x28] sm:$0xff]
        %v323 = vld [vmem:[%s3 + $0x30] sm:$0xff]
        %v324 = vld [vmem:[%s3 + $0x38] sm:$0xff]
        %v325 = vld [vmem:[%s3 + $0x40] sm:$0xff]
        %v326 = vld [vmem:[%s3 + $0x48] sm:$0xff]
        %v327 = vld [vmem:[%s3 + $0x50] sm:$0xff]
        %v328 = vld [vmem:[%s3 + $0x58] sm:$0xff]
        %v329 = vld [vmem:[%s3 + $0x60] sm:$0xff]
        %v330 = vld [vmem:[%s3 + $0x68] sm:$0xff]
        %v331 = vld [vmem:[%s3 + $0x70] sm:$0xff]
        %v332 = vld [vmem:[%s3 + $0x78] sm:$0xff]
        %v333 = vld [vmem:[%s4] sm:$0x1]
        %v335 = vlaneseq
        %v336 = vshrl.u32 %v335, 7
        %v337 = vsub.s32 0, %v336
        %v338 = vrot.slane %v333, %v337
        %340 = vmatprep.subr.mxu0 0.0
        %341 = vmatpush1.msra.mxu0 %v332
        %342 = vmatprep.subr.mxu0 0.0
        %343 = vmatpush1.msra.mxu0 %v331
        %344 = vmatprep.subr.mxu0 0.0
        %345 = vmatpush1.msra.mxu0 %v330
        %346 = vmatprep.subr.mxu0 0.0
        %347 = vmatpush1.msra.mxu0 %v329
        %348 = vmatprep.subr.mxu0 0.0
        %349 = vmatpush1.msra.mxu0 %v328
        %350 = vmatprep.subr.mxu0 0.0
        %351 = vmatpush1.msra.mxu0 %v327
        %352 = vmatprep.subr.mxu0 0.0
        %353 = vmatpush1.msra.mxu0 %v326
        %354 = vmatprep.subr.mxu0 0.0
        %355 = vmatpush1.msra.mxu0 %v325
        %356 = vmatprep.subr.mxu0 0.0
        %357 = vmatpush1.msra.mxu0 %v324
        %358 = vmatprep.subr.mxu0 0.0
        %359 = vmatpush1.msra.mxu0 %v323
        %360 = vmatprep.subr.mxu0 0.0
        %361 = vmatpush1.msra.mxu0 %v322
        %362 = vmatprep.subr.mxu0 0.0
        %363 = vmatpush1.msra.mxu0 %v321
        %364 = vmatprep.subr.mxu0 0.0
        %365 = vmatpush1.msra.mxu0 %v320
        %366 = vmatprep.subr.mxu0 0.0
        %367 = vmatpush1.msra.mxu0 %v319
        %368 = vmatprep.subr.mxu0 0.0
        %369 = vmatpush1.msra.mxu0 %v318
        %370 = vmatprep.subr.mxu0 0.0
        %371 = vmatpush1.msra.mxu0 %v317
        %372 = vmatprep.subr.mxu0 0.0
        %373 = vmatpush2.msra.mxu0 0.0
        %374 = vmatprep.subr.mxu0 0.0
        %375 = vmatpush2.msra.mxu0 0.0
        %376 = vmatprep.subr.mxu0 0.0
        %377 = vmatpush2.msra.mxu0 0.0
        %378 = vmatprep.subr.mxu0 0.0
        %379 = vmatpush2.msra.mxu0 0.0
        %380 = vmatprep.subr.mxu0 0.0
        %381 = vmatpush2.msra.mxu0 0.0
        %382 = vmatprep.subr.mxu0 0.0
        %383 = vmatpush2.msra.mxu0 0.0
        %384 = vmatprep.subr.mxu0 0.0
        %385 = vmatpush2.msra.mxu0 0.0
        %386 = vmatprep.subr.mxu0 0.0
        %387 = vmatpush2.msra.mxu0 0.0
        %388 = vmatprep.subr.mxu0 0.0
        %389 = vmatpush2.msra.mxu0 0.0
        %390 = vmatprep.subr.mxu0 0.0
        %391 = vmatpush2.msra.mxu0 0.0
        %392 = vmatprep.subr.mxu0 0.0
        %393 = vmatpush2.msra.mxu0 0.0
        %394 = vmatprep.subr.mxu0 0.0
        %395 = vmatpush2.msra.mxu0 0.0
        %396 = vmatprep.subr.mxu0 0.0
        %397 = vmatpush2.msra.mxu0 0.0
        %398 = vmatprep.subr.mxu0 0.0
        %399 = vmatpush2.msra.mxu0 0.0
        %400 = vmatprep.subr.mxu0 0.0
        %401 = vmatpush2.msra.mxu0 0.0
        %402 = vmatprep.subr.mxu0 0.0
        %403 = vmatpush2.msra.mxu0 0.0
        %404 = vmatprep.mubr.f32.mxu0 0.0
        %405 = vmatmul.mubr.f32.gmra.mxu0 %v316
        %v406 = vpop.f32.mrf.mxu0
        %v407 = vadd.f32 %v338, %v406
        %v408 = vpop.f32.mrf.mxu0
        %409 = vdwg.mxu0
        %410 = vst.msk [vmem:[%s215] sm:$0xff] %vm232, %v407
        %s411 = sand.u32 %s137, 1
        %s412 = scalar_lea.sflag [#allocation4], %s411
        %s413 = sand.u32 %s137, 1
        %s414 = smul.addr %s413, 8
        %s415 = scalar_lea.vmem [#allocation3], %s414
        // Predicated region
        $region41: #{tpu_custom_call.1} parent=39 // pred_check
          %p416 = pneg %p147
        $region42: #{tpu_custom_call.1} parent=39 // pred_check_branch
          %418 = sbr.rel (%p416) target = $region44
        $region43: #{tpu_custom_call.1} parent=39 // pred_region
          %s420 = ssub.s32 128, 128
          %421 = vsyncadd %s412, %s420
          %s422 = smul.addr %s19, 128
          %s423 = scalar_lea.hbm %s5, %s422
          %s425 = sshll.u32 %s415, 4
          %s426 = int_to_ptr.vmem [resolvable:$true] %s425
          %428 = dma.vmem_to_hbm [thread:$0]  %s426, 128, %s423, %s412
        $region44: #{tpu_custom_call.1} parent=39 // pred_fallthru
          _
      $region40: #{tpu_custom_call.1} parent=5 // pred_fallthru
        _
      %p429 = scmp.le.s32.totalorder 2, %s14
      // Predicated region
      $region45: #{tpu_custom_call.1} parent=5 // pred_check
        %p430 = pneg %p429
      $region46: #{tpu_custom_call.1} parent=5 // pred_check_branch
        %432 = sbr.rel (%p430) target = $region48
      $region47: #{tpu_custom_call.1} parent=5 // pred_region
        %s433 = ssub.s32 %s14, 2
        // Predicated region
        $region49: #{tpu_custom_call.1} parent=47 // pred_check
          %p434 = pneg %p153
        $region50: #{tpu_custom_call.1} parent=47 // pred_check_branch
          %436 = sbr.rel (%p434) target = $region52
        $region51: #{tpu_custom_call.1} parent=47 // pred_region
          %s437 = sand.u32 %s138, 1
          %s438 = scalar_lea.sflag [#allocation4], %s437
          %s439 = sand.u32 %s138, 1
          %s440 = smul.addr %s439, 8
          %s441 = scalar_lea.vmem [#allocation3], %s440
          %442 = dma.done %s438, 128
        $region52: #{tpu_custom_call.1} parent=47 // pred_fallthru
          _
      $region48: #{tpu_custom_call.1} parent=5 // pred_fallthru
        _
    $region6: #{tpu_custom_call.1} parent=1 // loop_footer
      %s18 = sadd.s32 1, %s14
    $region7: #{tpu_custom_call.1} parent=1 // loop_footer_branch
      %13 = sbr.rel target = $region3
    $region8: #{tpu_custom_call.1} parent=1 // loop_exit
      _
    %443 = vsyncpa [#allocation4], 1
    %s444 = scalar_lea.sflag [#allocation4], 1
    %445 = vsyncpa %s444, 1

</llo_original>
